<compile_context>
chip_gen: v5e
topology: v5e:2x2
jax: 0.10.0
libtpu: 0.0.40
codegen_flags: <defaults>
</compile_context>

<pallas_src>
import functools

import jax
import jax.numpy as jnp
from jax import lax
from jax.experimental import pallas as pl
from jax.experimental.pallas import tpu as pltpu


def _round_up(v, m):
    return ((v + m - 1) // m) * m


def _lmr_recon_kernel(xn_ref, xb_ref, fs_ref, xq_ref, cq_ref, r_ref, *,
                      tq, n_pad):
    """One query-row block of the LMR reconstruction.

    xn_ref (Np, Dp) bf16  layer-normed / sqrt(dim) features (keys), resident
    xb_ref (Np, Dp) bf16  bf16 copy of x (reconstruction matmul RHS), resident
    fs_ref (1,  Np) f32   few-shot column mask (padded cols flagged 1.0), resident
    xq_ref (tq, Dp) f32   f32 query rows of x (for the contrib blend), block
    cq_ref (tq, 1)  f32   contrib = c[y] for the query rows, block
    r_ref  (tq, Dp) f32   reconstruction R for the query rows, block (output)
    """
    i = pl.program_id(0)
    row0 = pl.multiple_of(i * tq, tq)

    xnq = xn_ref[pl.ds(row0, tq), :]                                # (tq, Dp) bf16

    # similarity: NT contraction (no explicit transpose), bf16 in / f32 acc.
    sim = lax.dot_general(
        xnq, xn_ref[...],
        dimension_numbers=(((1,), (1,)), ((), ())),
        preferred_element_type=jnp.float32)                         # (tq, Np)

    # mask self column + few-shot columns.  Padded key columns are flagged 1.0
    # in fs_ref, so a single select covers them too.
    rows = row0 + lax.broadcasted_iota(jnp.int32, (tq, n_pad), 0)
    cols = lax.broadcasted_iota(jnp.int32, (tq, n_pad), 1)
    masked = jnp.logical_or(rows == cols, fs_ref[...] >= 0.5)
    sim = jnp.where(masked, -1e9, sim)

    # softmax with the denominator folded into the (tq, Dp) result: saves a
    # (tq, Np) multiply per step; p goes to the MXU unnormalized in bf16.
    m = jnp.max(sim, axis=-1, keepdims=True)
    p = jnp.exp(sim - m)                                            # (tq, Np)
    denom = jnp.sum(p, axis=-1, keepdims=True)

    recon = lax.dot_general(
        p.astype(jnp.bfloat16), xb_ref[...],
        dimension_numbers=(((1,), (0,)), ((), ())),
        preferred_element_type=jnp.float32)                         # (tq, Dp)
    recon = recon * pl.reciprocal(denom, approx=True)               # EUP divide

    contrib = cq_ref[...]                                           # (tq, 1)
    r_ref[...] = recon * contrib + xq_ref[...] * (1.0 - contrib)


def lmr_mix_params(key, n):
    """torch.randint / torch.rand equivalents for pairwise_mix."""
    k1, k2, k3 = jax.random.split(key, 3)
    beta_idx = jax.random.randint(k1, (n,), 0, n, dtype=jnp.int32)
    u1 = jax.random.uniform(k2, (n,), dtype=jnp.float32)
    u2 = jax.random.uniform(k3, (n,), dtype=jnp.float32)
    alpha = jnp.where(u1 > 0.5, u2, jnp.ones((n,), jnp.float32))
    return beta_idx, alpha


def _tile_plan(n):
    """Rows-per-step (multiple of 16 for the bf16 (16,128) packing tile) and a
    per-chip VMEM limit (~100 MiB on 128 MiB chips, ~56 MiB on v7x)."""
    tq = 256 if n >= 256 else _round_up(max(n, 16), 16)
    n_pad = _round_up(n, tq)
    try:
        vmem_cap = int(pltpu.get_tpu_info().vmem_capacity_bytes)
    except Exception:
        vmem_cap = 64 * 1024 * 1024
    vmem_limit = min(100 * 1024 * 1024, vmem_cap - 8 * 1024 * 1024)
    return tq, n_pad, vmem_limit


def lmr_forward(x, y, class_counts, l, d_scale, omega, epsilon, key,
                training=True):
    """JAX/Pallas equivalent of LMR.forward (training path)."""
    if not training:
        return x, y

    n, dim = x.shape
    num_classes = int(class_counts.shape[0])

    # --- module __init__ glue: class weights + few-shot classes --------------
    tilde_c = 1.0 / jnp.log(class_counts * d_scale + epsilon)
    c = (tilde_c - jnp.min(tilde_c)) / (jnp.max(tilde_c) - jnp.min(tilde_c)) * l
    fs_classes = jnp.where(class_counts <= omega, 1.0, 0.0)

    beta_idx, alpha = lmr_mix_params(key, n)

    # --- pad to TPU-friendly shapes: lanes (D) -> x128, rows -> x tq ----------
    tq, n_pad, vmem_limit = _tile_plan(n)
    d_pad = _round_up(dim, 128)
    nb = n_pad // tq

    xf = x.astype(jnp.float32)
    # layer_norm (two-pass mean/var, eps=1e-5, no affine) / sqrt(dim): done once
    # in XLA so the kernel has no init prologue and the grid axis is parallel.
    mu = jnp.mean(xf, axis=-1, keepdims=True)
    var = jnp.mean((xf - mu) ** 2, axis=-1, keepdims=True)
    x_norm = (xf - mu) / jnp.sqrt(var + 1e-5) / jnp.sqrt(jnp.float32(dim))

    x_p = jnp.zeros((n_pad, d_pad), jnp.float32).at[:n, :dim].set(xf)
    xn_p = jnp.zeros((n_pad, d_pad), jnp.bfloat16).at[:n, :dim].set(
        x_norm.astype(jnp.bfloat16))
    xb_p = x_p.astype(jnp.bfloat16)
    # few-shot column mask as a row; padded columns flagged 1.0 so real rows
    # never attend to padding.
    fs_row = jnp.ones((1, n_pad), jnp.float32).at[0, :n].set(fs_classes[y])
    cq = jnp.zeros((n_pad, 1), jnp.float32).at[:n, 0].set(c[y])

    kernel = functools.partial(_lmr_recon_kernel, tq=tq, n_pad=n_pad)
    resident = pl.Buffered(1)   # constant-index blocks: no double buffering

    r_p = pl.pallas_call(
        kernel,
        out_shape=jax.ShapeDtypeStruct((n_pad, d_pad), jnp.float32),
        grid=(nb,),
        in_specs=[
            pl.BlockSpec((n_pad, d_pad), lambda i: (0, 0),
                         pipeline_mode=resident),                  # x_norm bf16
            pl.BlockSpec((n_pad, d_pad), lambda i: (0, 0),
                         pipeline_mode=resident),                  # x bf16
            pl.BlockSpec((1, n_pad), lambda i: (0, 0),
                         pipeline_mode=resident),                  # fs row
            pl.BlockSpec((tq, d_pad), lambda i: (i, 0)),           # x f32 (block)
            pl.BlockSpec((tq, 1), lambda i: (i, 0)),               # contrib
        ],
        out_specs=pl.BlockSpec((tq, d_pad), lambda i: (i, 0)),     # R (block)
        compiler_params=pltpu.CompilerParams(
            dimension_semantics=("parallel",),
            vmem_limit_bytes=vmem_limit),
    )(xn_p, xb_p, fs_row, x_p, cq)

    R = r_p[:n, :dim]

    # --- pairwise mix: M @ R / M @ y_oh == per-row beta gather + alpha blend.
    # Done in XLA (HBM-roofline gather); keeping it out of the kernel is what
    # lets the grid axis stay parallel and drops three full-size VMEM buffers.
    y_oh = jax.nn.one_hot(y, num_classes, dtype=jnp.float32)
    a = alpha[:, None]
    xo = a * R + (1.0 - a) * R[beta_idx]
    yo = a * y_oh + (1.0 - a) * y_oh[beta_idx]
    return xo, yo


def lmr_reference(x, y, class_counts, l, d_scale, omega, epsilon, beta_idx,
                  alpha):
    """Pure-JAX mirror of the PyTorch module (same alpha/beta draws)."""
    n, dim = x.shape
    num_classes = class_counts.shape[0]
    tilde_c = 1.0 / jnp.log(class_counts * d_scale + epsilon)
    c = (tilde_c - jnp.min(tilde_c)) / (jnp.max(tilde_c) - jnp.min(tilde_c)) * l
    fs_classes = jnp.where(class_counts <= omega, 1.0, 0.0)

    mu = jnp.mean(x, axis=-1, keepdims=True)
    var = jnp.mean((x - mu) ** 2, axis=-1, keepdims=True)
    x_norm = (x - mu) / jnp.sqrt(var + 1e-5) / jnp.sqrt(float(dim))
    sim = x_norm @ x_norm.T
    E = jnp.eye(n) + fs_classes[y][None, :]
    E = jnp.where(E >= 1.0, 1.0, 0.0)
    sim = sim - 100000.0 * E
    p = jax.nn.softmax(sim, axis=-1)
    contrib = c[y][:, None]
    R = (p @ x) * contrib + x * (1.0 - contrib)
    y_oh = jax.nn.one_hot(y, num_classes, dtype=jnp.float32)
    a = alpha[:, None]
    xo = a * R + (1.0 - a) * R[beta_idx]
    yo = a * y_oh + (1.0 - a) * y_oh[beta_idx]
    return xo, yo


if __name__ == "__main__":
    # Deterministic LMR "module" parameters (synthetic, matching __init__).
    class_counts = jnp.array([100.0, 5.0, 50.0, 2.0], dtype=jnp.float32)
    l_param = 0.5       # self.l
    d_param = 1.0       # self.d
    omega = 10.0        # self.omega  -> classes 1, 3 are few-shot
    epsilon = 0.1       # self.epsilon

    key = jax.random.PRNGKey(0)
    kx, kmix = jax.random.split(key, 2)
    batch, hidden = 8, 32
    x = jax.random.normal(kx, (batch, hidden), dtype=jnp.float32)
    # Fixed labels covering head and few-shot classes.  (Avoids the degenerate
    # "every other row is few-shot" corner, where the original module's softmax
    # over -100000-shifted values is itself pathological and the hard -1e9 mask
    # used here would differ slightly.)
    y = jnp.array([0, 1, 2, 3, 0, 1, 2, 3], dtype=jnp.int32)

    x_out, y_out = lmr_forward(x, y, class_counts, l_param, d_param, omega,
                               epsilon, kmix, training=True)
    jax.block_until_ready((x_out, y_out))

    assert x_out.shape == (batch, hidden)
    assert y_out.shape == (batch, class_counts.shape[0])

    # Correctness check vs. pure-JAX reference (loose tol: bf16 MXU operands,
    # approx EUP reciprocal).
    beta_idx, alpha = lmr_mix_params(kmix, batch)
    x_ref, y_ref = lmr_reference(x, y, class_counts, l_param, d_param, omega,
                                 epsilon, beta_idx, alpha)
    assert jnp.allclose(x_out, x_ref, atol=5e-2, rtol=5e-2), \
        float(jnp.max(jnp.abs(x_out - x_ref)))
    assert jnp.allclose(y_out, y_ref, atol=1e-3, rtol=1e-3)

    print("KERNEL_OK")
</pallas_src>

<mosaic_0001>
module attributes {stable_mosaic.version = 11 : i64} {
  func.func @_lmr_recon_kernel(%arg0: i32, %arg1: memref<16x128xbf16, #tpu.memory_space<vmem>>, %arg2: memref<16x128xbf16, #tpu.memory_space<vmem>>, %arg3: memref<1x16xf32, #tpu.memory_space<vmem>>, %arg4: memref<16x128xf32, #tpu.memory_space<vmem>>, %arg5: memref<16x1xf32, #tpu.memory_space<vmem>>, %arg6: memref<16x128xf32, #tpu.memory_space<vmem>>) attributes {dimension_semantics = [#tpu.dimension_semantics<parallel>], iteration_bounds = array<i64: 1>, scalar_prefetch = 0 : i64, scratch_operands = 0 : i64, tpu.core_type = #tpu.core_type<tc>, window_params = [{pipeline_mode = #tpu.pipeline_mode<synchronous>, transform_indices = @transform_0, window_bounds = array<i64: 16, 128>}, {pipeline_mode = #tpu.pipeline_mode<synchronous>, transform_indices = @transform_1, window_bounds = array<i64: 16, 128>}, {pipeline_mode = #tpu.pipeline_mode<synchronous>, transform_indices = @transform_2, window_bounds = array<i64: 1, 16>}, {transform_indices = @transform_3, window_bounds = array<i64: 16, 128>}, {transform_indices = @transform_4, window_bounds = array<i64: 16, 1>}, {transform_indices = @transform_5, window_bounds = array<i64: 16, 128>}]} {
    %c16_i32 = arith.constant 16 : i32
    %0 = arith.muli %arg0, %c16_i32 : i32
    %1 = tpu.assume_multiple %0, 16 : i32
    %2 = arith.index_cast %1 : i32 to index
    %c0 = arith.constant 0 : index
    %3 = vector.load %arg1[%2, %c0] : memref<16x128xbf16, #tpu.memory_space<vmem>>, vector<16x128xbf16>
    %c0_0 = arith.constant 0 : index
    %c0_1 = arith.constant 0 : index
    %4 = vector.load %arg1[%c0_0, %c0_1] : memref<16x128xbf16, #tpu.memory_space<vmem>>, vector<16x128xbf16>
    %cst = arith.constant dense<0.000000e+00> : vector<16x16xf32>
    %5 = tpu.matmul %3, %4, %cst {dimension_numbers = #tpu.dot_dimension_numbers<[1], [1], [0], [0], [0, 0, 1, 0], [], []>} : vector<16x128xbf16>, vector<16x128xbf16>, vector<16x16xf32> -> vector<16x16xf32>
    %6 = tpu.iota {dimensions = array<i32: 0>} : vector<16x16xi32>
    %7 = vector.broadcast %1 : i32 to vector<16x16xi32>
    %8 = arith.addi %7, %6 : vector<16x16xi32>
    %9 = tpu.iota {dimensions = array<i32: 1>} : vector<16x16xi32>
    %10 = arith.cmpi eq, %8, %9 : vector<16x16xi32>
    %c0_2 = arith.constant 0 : index
    %c0_3 = arith.constant 0 : index
    %11 = vector.load %arg3[%c0_2, %c0_3] : memref<1x16xf32, #tpu.memory_space<vmem>>, vector<1x16xf32>
    %cst_4 = arith.constant 5.000000e-01 : f32
    %12 = vector.broadcast %cst_4 : f32 to vector<1x16xf32>
    %13 = arith.cmpf oge, %11, %12 : vector<1x16xf32>
    %14 = vector.broadcast %13 : vector<1x16xi1> to vector<16x16xi1>
    %15 = arith.ori %10, %14 : vector<16x16xi1>
    %cst_5 = arith.constant -1.000000e+09 : f32
    %16 = vector.broadcast %cst_5 : f32 to vector<16x16xf32>
    %17 = arith.select %15, %16, %5 : vector<16x16xi1>, vector<16x16xf32>
    %cst_6 = arith.constant dense<0xFF800000> : vector<16xf32>
    %18 = vector.multi_reduction <maximumf>, %17, %cst_6 [1] : vector<16x16xf32> to vector<16xf32>
    %19 = vector.shape_cast %18 : vector<16xf32> to vector<16x1xf32>
    %20 = vector.broadcast %19 : vector<16x1xf32> to vector<16x16xf32>
    %21 = arith.subf %17, %20 : vector<16x16xf32>
    %22 = math.exp %21 : vector<16x16xf32>
    %cst_7 = arith.constant dense<0.000000e+00> : vector<16xf32>
    %23 = vector.multi_reduction <add>, %22, %cst_7 [1] : vector<16x16xf32> to vector<16xf32>
    %24 = vector.shape_cast %23 : vector<16xf32> to vector<16x1xf32>
    %25 = arith.truncf %22 : vector<16x16xf32> to vector<16x16xbf16>
    %c0_8 = arith.constant 0 : index
    %c0_9 = arith.constant 0 : index
    %26 = vector.load %arg2[%c0_8, %c0_9] : memref<16x128xbf16, #tpu.memory_space<vmem>>, vector<16x128xbf16>
    %cst_10 = arith.constant dense<0.000000e+00> : vector<16x128xf32>
    %27 = tpu.matmul %25, %26, %cst_10 {dimension_numbers = #tpu.dot_dimension_numbers<[1], [0], [0], [1], [0, 0, 1, 1], [], []>} : vector<16x16xbf16>, vector<16x128xbf16>, vector<16x128xf32> -> vector<16x128xf32>
    %28 = tpu.reciprocal %24 {approx = true} : vector<16x1xf32> -> vector<16x1xf32>
    %29 = vector.broadcast %28 : vector<16x1xf32> to vector<16x128xf32>
    %30 = arith.mulf %27, %29 : vector<16x128xf32>
    %c0_11 = arith.constant 0 : index
    %c0_12 = arith.constant 0 : index
    %31 = vector.load %arg5[%c0_11, %c0_12] : memref<16x1xf32, #tpu.memory_space<vmem>>, vector<16x1xf32>
    %32 = vector.broadcast %31 : vector<16x1xf32> to vector<16x128xf32>
    %33 = arith.mulf %30, %32 : vector<16x128xf32>
    %c0_13 = arith.constant 0 : index
    %c0_14 = arith.constant 0 : index
    %34 = vector.load %arg4[%c0_13, %c0_14] : memref<16x128xf32, #tpu.memory_space<vmem>>, vector<16x128xf32>
    %cst_15 = arith.constant 1.000000e+00 : f32
    %35 = vector.broadcast %cst_15 : f32 to vector<16x1xf32>
    %36 = arith.subf %35, %31 : vector<16x1xf32>
    %37 = vector.broadcast %36 : vector<16x1xf32> to vector<16x128xf32>
    %38 = arith.mulf %34, %37 : vector<16x128xf32>
    %39 = arith.addf %33, %38 : vector<16x128xf32>
    %c0_16 = arith.constant 0 : index
    %c0_17 = arith.constant 0 : index
    %40 = vector.load %arg6[%c0_16, %c0_17] : memref<16x128xf32, #tpu.memory_space<vmem>>, vector<16x128xf32>
    tpu.vector_store %arg6[%c0_16, %c0_17], %39 {strides = array<i32>} : memref<16x128xf32, #tpu.memory_space<vmem>>, vector<16x128xf32>,
    return
  }
  func.func @transform_0(%arg0: i32) -> (i32, i32) {
    %c0_i32 = arith.constant 0 : i32
    %c0_i32_0 = arith.constant 0 : i32
    %c0_i32_1 = arith.constant 0 : i32
    return %c0_i32, %c0_i32_0 : i32, i32
  }
  func.func @transform_1(%arg0: i32) -> (i32, i32) {
    %c0_i32 = arith.constant 0 : i32
    %c0_i32_0 = arith.constant 0 : i32
    %c0_i32_1 = arith.constant 0 : i32
    return %c0_i32, %c0_i32_0 : i32, i32
  }
  func.func @transform_2(%arg0: i32) -> (i32, i32) {
    %c0_i32 = arith.constant 0 : i32
    %c0_i32_0 = arith.constant 0 : i32
    %c0_i32_1 = arith.constant 0 : i32
    return %c0_i32, %c0_i32_0 : i32, i32
  }
  func.func @transform_3(%arg0: i32) -> (i32, i32) {
    %c0_i32 = arith.constant 0 : i32
    %c0_i32_0 = arith.constant 0 : i32
    return %arg0, %c0_i32 : i32, i32
  }
  func.func @transform_4(%arg0: i32) -> (i32, i32) {
    %c0_i32 = arith.constant 0 : i32
    %c0_i32_0 = arith.constant 0 : i32
    return %arg0, %c0_i32 : i32, i32
  }
  func.func @transform_5(%arg0: i32) -> (i32, i32) {
    %c0_i32 = arith.constant 0 : i32
    %c0_i32_0 = arith.constant 0 : i32
    return %arg0, %c0_i32 : i32, i32
  }
}

</mosaic_0001>

<llo_original>
// kernel: tpu_custom_call.1
$region0: #{tpu_custom_call.1}
  #allocation0 [shape = 'u32[]', space=smem, size = 0x4, offset = 0x4, fixed_abs, tag = 'smem constant byte address 0x4 - core index']
  #allocation1 [shape = 'u32[72,128]{1,0:T(1,128)}', space=vmem, size = 0x9000, scoped, tag = 'internal scratch']
  %s0 = inlined_call_operand.hbm [shape: bf16[16,128], index: 0, kind: input, shape index: {}]
  %s1 = inlined_call_operand.hbm [shape: bf16[16,128], index: 1, kind: input, shape index: {}]
  %s2 = inlined_call_operand.vmem [shape: f32[1,16], index: 2, kind: input, shape index: {}]
  %s3 = inlined_call_operand.vmem [shape: f32[16,128], index: 3, kind: input, shape index: {}]
  %s4 = inlined_call_operand.vmem [shape: f32[16,1], index: 4, kind: input, shape index: {}]
  %s5 = inlined_call_operand.hbm [shape: f32[16,128], index: 5, kind: output, shape index: {}]
  %s6 = sld [smem:[#allocation0]]
  $region38: #{tpu_custom_call.1} parent=0
    _
  %s8 = ssub.s32 1, %s6
  %s9 = scalar_select 0, %s8, %s6
  $region1: #{tpu_custom_call.1} parent=0
    #allocation2 [shape = 'u8[4096]{0}', space=vmem, size = 0x1000, scoped, tag = 'input window, operand 0, single buffered']
    #allocation3 [shape = 's32[1]{0}', space=sflag, size = 0x4, scoped, tag = 'scoped memory for tpu_custom_call.1']
    #allocation4 [shape = 's32[1]{0}', space=sflag, size = 0x4, scoped, tag = 'scoped memory for tpu_custom_call.1']
    #allocation5 [shape = 'u8[4096]{0}', space=vmem, size = 0x1000, scoped, tag = 'input window, operand 1, single buffered']
    #allocation6 [shape = 's32[1]{0}', space=sflag, size = 0x4, scoped, tag = 'scoped memory for tpu_custom_call.1']
    #allocation7 [shape = 'u8[8192]{0}', space=vmem, size = 0x2000, scoped, tag = 'output window, operand 0, single buffered']
    %10 = vsyncpa [#allocation3], 0
    %11 = vsyncpa [#allocation6], 0
    %12 = vsyncpa [#allocation4], 0
    // Predicated region
    $region2: #{tpu_custom_call.1} parent=1 // pred_check
      _
    $region3: #{tpu_custom_call.1} parent=1 // pred_check_branch
      %14 = sbr.rel (0) target = $region5
    $region4: #{tpu_custom_call.1} parent=1 // pred_region
      %16 = vsyncadd [#allocation3], 0
      %s17 = sshll.u32 %s0, 4
      %s18 = int_to_ptr.hbm [resolvable:$true] %s17
      %s19 = sshll.u32 [#allocation2], 4
      %s20 = int_to_ptr.vmem [resolvable:$true] %s19
      %25 = dma.hbm_to_vmem [thread:$0]  %s18, 128, %s20, [#allocation3], 64, 64, 4
    $region5: #{tpu_custom_call.1} parent=1 // pred_fallthru
      _
    // Predicated region
    $region6: #{tpu_custom_call.1} parent=1 // pred_check
      _
    $region7: #{tpu_custom_call.1} parent=1 // pred_check_branch
      %27 = sbr.rel (0) target = $region9
    $region8: #{tpu_custom_call.1} parent=1 // pred_region
      %29 = vsyncadd [#allocation6], 0
      %s30 = sshll.u32 %s1, 4
      %s31 = int_to_ptr.hbm [resolvable:$true] %s30
      %s32 = sshll.u32 [#allocation5], 4
      %s33 = int_to_ptr.vmem [resolvable:$true] %s32
      %38 = dma.hbm_to_vmem [thread:$0]  %s31, 128, %s33, [#allocation6], 64, 64, 4
    $region9: #{tpu_custom_call.1} parent=1 // pred_fallthru
      _
    // Predicated region
    $region10: #{tpu_custom_call.1} parent=1 // pred_check
      _
    $region11: #{tpu_custom_call.1} parent=1 // pred_check_branch
      %40 = sbr.rel (0) target = $region13
    $region12: #{tpu_custom_call.1} parent=1 // pred_region
      _
    $region13: #{tpu_custom_call.1} parent=1 // pred_fallthru
      _
    // Predicated region
    $region14: #{tpu_custom_call.1} parent=1 // pred_check
      _
    $region15: #{tpu_custom_call.1} parent=1 // pred_check_branch
      %42 = sbr.rel (0) target = $region17
    $region16: #{tpu_custom_call.1} parent=1 // pred_region
      _
    $region17: #{tpu_custom_call.1} parent=1 // pred_fallthru
      _
    // Predicated region
    $region18: #{tpu_custom_call.1} parent=1 // pred_check
      _
    $region19: #{tpu_custom_call.1} parent=1 // pred_check_branch
      %44 = sbr.rel (0) target = $region21
    $region20: #{tpu_custom_call.1} parent=1 // pred_region
      _
    $region21: #{tpu_custom_call.1} parent=1 // pred_fallthru
      _
    // Predicated region
    $region22: #{tpu_custom_call.1} parent=1 // pred_check
      _
    $region23: #{tpu_custom_call.1} parent=1 // pred_check_branch
      %46 = sbr.rel (0) target = $region25
    $region24: #{tpu_custom_call.1} parent=1 // pred_region
      %48 = dma.done [#allocation3], 128
    $region25: #{tpu_custom_call.1} parent=1 // pred_fallthru
      _
    // Predicated region
    $region26: #{tpu_custom_call.1} parent=1 // pred_check
      _
    $region27: #{tpu_custom_call.1} parent=1 // pred_check_branch
      %50 = sbr.rel (0) target = $region29
    $region28: #{tpu_custom_call.1} parent=1 // pred_region
      %52 = dma.done [#allocation6], 128
    $region29: #{tpu_custom_call.1} parent=1 // pred_fallthru
      _
    %s54 = smul.u32 0, 16
    %s55 = sshra.s32 %s54, 3
    %s56 = sand.u32 %s54, 7
    %s57 = smul.addr %s55, 4
    %s58 = scalar_lea.vmem [#allocation2], %s57
    %v59 = vld [vmem:[%s58] sm:$0xf]
    %v60 = vld [vmem:[%s58 + $0x4] sm:$0xf]
    %v61 = vld [vmem:[#allocation2] sm:$0xf]
    %v62 = vld [vmem:[#allocation2 + $0x4] sm:$0xf]
    %v65 = vunpack.c.l.b16 %v59
    %v66 = vunpack.c.l.b16 %v60
    %v67 = vpack.c.b16 %v66, %v65
    %v71 = vunpack.c.l.b16 %v61
    %v72 = vunpack.c.l.b16 %v62
    %v73 = vpack.c.b16 %v72, %v71
    %75 = vmatpush.bf16.xpose.msra.mxu0 0
    %76 = vmatpush.bf16.xpose.msra.mxu0 0
    %77 = vmatpush.bf16.xpose.msra.mxu0 0
    %78 = vmatpush.bf16.xpose.msra.mxu0 0
    %79 = vmatpush.bf16.xpose.msra.mxu0 0
    %80 = vmatpush.bf16.xpose.msra.mxu0 0
    %81 = vmatpush.bf16.xpose.msra.mxu0 0
    %82 = vmatpush.bf16.xpose.msra.mxu0 %v73
    %83 = vmatmul.bf16.gmra.mxu0 %v67
    %v84 = vpop.f32.mrf.mxu0
    %v85 = vadd.f32 0.0, %v84
    %v86 = vpop.f32.mrf.mxu0
    %v87 = vadd.f32 0.0, %v86
    %88 = vdwg.mxu0
    %v89 = vlaneseq
    %v90 = vshrl.u32 %v89, 7
    %v91 = vadd.s32 %v90, 8
    %v92 = vstv %s54
    %v93 = vadd.s32 %v92, %v90
    %v94 = vadd.s32 %v92, %v91
    %v95 = vlaneseq
    %v96 = vand.u32 %v95, 127
    %vm97 = vcmp.eq.s32.totalorder %v93, %v96
    %vm98 = vcmp.eq.s32.totalorder %v94, %v96
    %v99 = vld [vmem:[%s2] sm:$0x1]
    %vm100 = vcmp.ge.f32.partialorder %v99, 0.5
    %v101 = vsel %vm100, 1, 0
    %v102 = vperm.slane %v101, 0
    %vm103 = vcmp.eq.s32.totalorder %v102, 1
    %vm104 = vmor %vm97, %vm103
    %vm105 = vmor %vm98, %vm103
    %v106 = vsel %vm104, -1e+09, %v85
    %v107 = vsel %vm105, -1e+09, %v87
    %vm108 = vcmask 130048
    %v109 = vsel %vm108, %v106, -inf
    %110 = vmax.xlane.f32.xlu0 %v109
    %v111 = vpop.xlane.xlu0 %110
    %v112 = vsel %vm108, %v107, -inf
    %113 = vmax.xlane.f32.xlu0 %v112
    %v114 = vpop.xlane.xlu0 %113
    %v115 = vsub.f32 %v106, %v111
    %v116 = vsub.f32 %v107, %v114
    %v117 = vmul.f32 %v115, 1.442695
    %v118 = vpow.pop %v117
    %v119 = vmul.f32 %v116, 1.442695
    %v120 = vpow.pop %v119
    %v121 = vsel %vm108, %v118, 0.0
    %122 = vadd.xlane.f32.xlu0 %v121
    %v123 = vpop.xlane.xlu0 %122
    %v124 = vsel %vm108, %v120, 0.0
    %125 = vadd.xlane.f32.xlu0 %v124
    %v126 = vpop.xlane.xlu0 %125
    %v127 = vpack.c.bf16 %v120, %v118
    %v128 = vld [vmem:[#allocation5] sm:$0xf]
    %v129 = vld [vmem:[#allocation5 + $0x4] sm:$0xf]
    %v132 = vunpack.c.l.b16 %v128
    %v133 = vunpack.c.l.b16 %v129
    %v134 = vpack.c.b16 %v133, %v132
    %v137 = vsel %vm108, %v127, 0
    %139 = vmatpush.bf16.msra.mxu0 0
    %140 = vmatpush.bf16.msra.mxu0 0
    %141 = vmatpush.bf16.msra.mxu0 0
    %142 = vmatpush.bf16.msra.mxu0 0
    %143 = vmatpush.bf16.msra.mxu0 0
    %144 = vmatpush.bf16.msra.mxu0 0
    %145 = vmatpush.bf16.msra.mxu0 0
    %146 = vmatpush.bf16.msra.mxu0 %v134
    %147 = vmatmul.bf16.gmra.mxu0 %v137
    %v148 = vpop.f32.mrf.mxu0
    %v149 = vadd.f32 0.0, %v148
    %v150 = vpop.f32.mrf.mxu0
    %v151 = vadd.f32 0.0, %v150
    %152 = vdwg.mxu0
    %v153 = vrcp.pop %v123
    %v154 = vrcp.pop %v126
    %v155 = vmul.f32 %v149, %v153
    %v156 = vmul.f32 %v151, %v154
    %v157 = vld [vmem:[%s4] sm:$0xff]
    %v158 = vld [vmem:[%s4 + $0x8] sm:$0xff]
    %160 = vset.pattern.permute.xlu0 0
    %161 = vperm.xlu0 %160, %v157
    %v162 = vpop.permute.xlu0 %161
    %165 = vset.pattern.permute.xlu0 0
    %166 = vperm.xlu0 %165, %v158
    %v167 = vpop.permute.xlu0 %166
    %v169 = vmul.f32 %v155, %v162
    %v170 = vmul.f32 %v156, %v167
    %v171 = vld [vmem:[%s3] sm:$0xff]
    %v172 = vld [vmem:[%s3 + $0x8] sm:$0xff]
    %v173 = vsub.f32 1.0, %v157
    %v174 = vsub.f32 1.0, %v158
    %176 = vset.pattern.permute.xlu0 0
    %177 = vperm.xlu0 %176, %v173
    %v178 = vpop.permute.xlu0 %177
    %181 = vset.pattern.permute.xlu0 0
    %182 = vperm.xlu0 %181, %v174
    %v183 = vpop.permute.xlu0 %182
    %v185 = vmul.f32 %v171, %v178
    %v186 = vmul.f32 %v172, %v183
    %v187 = vadd.f32 %v169, %v185
    %v188 = vadd.f32 %v170, %v186
    %189 = vst [vmem:[#allocation7] sm:$0xff] %v187
    %190 = vst [vmem:[#allocation7 + $0x8] sm:$0xff] %v188
    // Predicated region
    $region30: #{tpu_custom_call.1} parent=1 // pred_check
      _
    $region31: #{tpu_custom_call.1} parent=1 // pred_check_branch
      %192 = sbr.rel (0) target = $region33
    $region32: #{tpu_custom_call.1} parent=1 // pred_region
      %194 = vsyncadd [#allocation4], 0
      %s195 = sshll.u32 [#allocation7], 4
      %s196 = int_to_ptr.vmem [resolvable:$true] %s195
      %s197 = sshll.u32 %s5, 4
      %s198 = int_to_ptr.hbm [resolvable:$true] %s197
      %203 = dma.vmem_to_hbm [thread:$0]  %s196, 256, %s198, [#allocation4], 128, 128, 8
    $region33: #{tpu_custom_call.1} parent=1 // pred_fallthru
      _
    // Predicated region
    $region34: #{tpu_custom_call.1} parent=1 // pred_check
      _
    $region35: #{tpu_custom_call.1} parent=1 // pred_check_branch
      %205 = sbr.rel (0) target = $region37
    $region36: #{tpu_custom_call.1} parent=1 // pred_region
      %207 = dma.done [#allocation4], 256
    $region37: #{tpu_custom_call.1} parent=1 // pred_fallthru
      _
    %208 = vsyncpa [#allocation3], 1
    %209 = vsyncpa [#allocation6], 1
    %210 = vsyncpa [#allocation4], 1

</llo_original>
